<compile_context>
chip_gen: v5e
topology: v5e:2x2
jax: 0.10.0
libtpu: 0.0.40
codegen_flags: <defaults>
</compile_context>

<pallas_src>
import math

import numpy as np
import jax
import jax.numpy as jnp
from jax import lax
from jax.experimental import pallas as pl
from jax.experimental.pallas import tpu as pltpu

_EBLK = 128  # edges per chunk (one lane-width of edge metadata)


# ------------------------------ tiling helper ------------------------------

def _node_tile(n, r, cap=256):
    """Node tile size: divides n, sublane aligned, keeps tile*r modest, >=2 tiles."""
    cap = max(8, min(cap, max(8, (2048 // max(r, 1)) // 8 * 8)))
    best = None
    for t in range(min(n, cap), 0, -1):
        if n % t:
            continue
        if (t % 8 != 0) and (t != n):
            continue
        if n // t >= 2:          # feed both v7x TensorCores when possible
            return t
        if best is None:
            best = t
    return best if best is not None else n


# ------------------------------ forward builder ------------------------------

def make_gcn_forward(edges, n, emb, weights):
    """Build forward(x, conditional=None) -> (n, emb), mirroring GCN.forward.

    `edges` is {relation: (from_list, to_list)}, as consumed by util.adj.
    Graph preprocessing (adjacency, degrees, per-tile edge chunking) is host-side,
    mirroring the buffers torch builds in GCN.__init__.
    """
    r = len(edges)
    e = emb

    # --- util.adj + util.sum_sparse equivalents (host-side, done once) ---
    frm, to, rel = [], [], []
    for p in sorted(edges.keys()):
        fr, t_ = edges[p]
        assert len(fr) == len(t_)
        frm.extend(fr)
        to.extend(t_)
        rel.extend([p] * len(fr))
    frm = np.asarray(frm, np.int64)
    to = np.asarray(to, np.int64)
    rel = np.asarray(rel, np.int64)
    num_edges = frm.shape[0]

    # 1/deg per adjacency row (relation, from-node)  == util.sum_sparse
    deg = np.zeros((r * n,), np.float64)
    np.add.at(deg, rel * n + frm, 1.0)
    val = (1.0 / deg[rel * n + frm]).astype(np.float32)

    tn = _node_tile(n, r)
    num_tiles = n // tn
    rows_per_tile = tn * r                      # relation-major within a tile

    tile = frm // tn
    row_local = (rel * tn + (frm - tile * tn)).astype(np.int32)

    counts = np.bincount(tile, minlength=num_tiles).astype(np.int64)
    e_chunks = max(1, int(np.ceil(counts.max() / _EBLK))) if num_edges else 1
    e_tile = e_chunks * _EBLK

    # per-tile padded edge metadata (padding edges carry val == 0 -> contribute 0)
    row_pad = np.zeros((num_tiles, e_tile), np.int32)
    col_pad = np.zeros((num_tiles, e_tile), np.int32)
    val_pad = np.zeros((num_tiles, e_tile), np.float32)
    order = np.argsort(tile, kind="stable")
    tile_s = tile[order]
    starts = np.zeros(num_tiles, np.int64)
    starts[1:] = np.cumsum(counts)[:-1]
    pos = np.arange(num_edges, dtype=np.int64) - starts[tile_s]
    row_pad[tile_s, pos] = row_local[order]
    col_pad[tile_s, pos] = to[order].astype(np.int32)
    val_pad[tile_s, pos] = val[order]

    row_j = jnp.asarray(row_pad.reshape(num_tiles, e_chunks, _EBLK))     # lanes = edge
    val_j = jnp.asarray(val_pad.reshape(num_tiles, e_chunks, _EBLK))
    # source columns stored with edge index along sublanes -> (EBLK, 1) slices
    colT_j = jnp.asarray(
        col_pad.reshape(num_tiles, e_chunks, _EBLK).transpose(0, 2, 1))
    nchunks_j = jnp.asarray(np.ceil(counts / _EBLK).astype(np.int32))

    # pre-transposed weights, output columns padded to a lane-dense width
    e_out = e if e % 128 == 0 else ((e + 127) // 128) * 128
    w_t = jnp.swapaxes(jnp.asarray(weights, jnp.float32), 1, 2)          # (r, e, e)
    if e_out != e:
        w_t = jnp.pad(w_t, ((0, 0), (0, 0), (0, e_out - e)))
    w_j = w_t.astype(jnp.bfloat16)                                       # (r, e, e_out)

    # ------------------------------ fused kernel ------------------------------
    def _gcn_kernel(nch_ref, row_ref, colT_ref, val_ref, x_ref, w_ref,
                    out_ref, h_scr):
        t = pl.program_id(0)
        n_active = nch_ref[t]                    # chunks with real edges this tile
        x_b = x_ref[...]                         # (n, e) bf16, VMEM-resident

        h_scr[...] = jnp.zeros_like(h_scr)       # (rows_per_tile, e) f32

        # TODO(synk): static chunk loop; for very large per-tile edge counts
        # switch to lax.fori_loop with dynamic chunk slicing to bound unrolling,
        # and for very large n replace the one-hot gather (O(E*n*e) MXU work)
        # with a row gather (jnp.take / manual DMA gather).
        for c in range(e_chunks):
            @pl.when(c < n_active)
            def _(c=c):
                dst = row_ref[c:c + 1, :]        # (1, EBLK) local row = rel*tn + node
                vv = val_ref[c:c + 1, :]         # (1, EBLK) 1/deg (0 for padding)
                col = colT_ref[:, c:c + 1]       # (EBLK, 1) source node ids

                # one-hot gather of source rows:  (EBLK, n) @ (n, e) on the MXU
                g = jnp.where(
                    lax.broadcasted_iota(jnp.int32, (_EBLK, n), 1) == col,
                    1.0, 0.0).astype(jnp.bfloat16)
                xg = jnp.dot(g, x_b, preferred_element_type=jnp.float32)   # (EBLK, e)

                # one-hot scatter with 1/deg folded into its values
                s = jnp.where(
                    lax.broadcasted_iota(jnp.int32, (rows_per_tile, _EBLK), 0) == dst,
                    vv, 0.0).astype(jnp.bfloat16)
                h_scr[...] += jnp.dot(s, xg.astype(jnp.bfloat16),
                                      preferred_element_type=jnp.float32)

        # fused SumUnify:  out[node] = relu( sum_rel h[rel, node] @ W[rel].T )
        acc = jnp.zeros((tn, e_out), jnp.float32)
        for rl in range(r):
            hr = h_scr[rl * tn:(rl + 1) * tn, :].astype(jnp.bfloat16)
            acc = acc + jnp.dot(hr, w_ref[rl], preferred_element_type=jnp.float32)
        out_ref[...] = jnp.maximum(acc, 0.0).astype(out_ref.dtype)

    # VMEM budget (double-buffered inputs + scratch + one-hot temps) with headroom,
    # kept under v7x's 64 MiB physical VMEM.
    edge_bytes = 3 * e_chunks * _EBLK * 4
    vmem_est = (2 * (n * e * 2 + r * e * e_out * 2 + tn * e_out * 4 + edge_bytes)
                + rows_per_tile * e * 4
                + rows_per_tile * _EBLK * 4 + _EBLK * max(n, e_out) * 4)
    vmem_limit = int(min(max(2 * vmem_est + (8 << 20), 32 << 20), 56 << 20))

    gcn_call = pl.pallas_call(
        _gcn_kernel,
        out_shape=jax.ShapeDtypeStruct((n, e_out), jnp.float32),
        grid_spec=pltpu.PrefetchScalarGridSpec(
            num_scalar_prefetch=1,                       # per-tile chunk counts only
            grid=(num_tiles,),
            in_specs=[
                pl.BlockSpec((None, e_chunks, _EBLK), lambda t, nch: (t, 0, 0)),
                pl.BlockSpec((None, _EBLK, e_chunks), lambda t, nch: (t, 0, 0)),
                pl.BlockSpec((None, e_chunks, _EBLK), lambda t, nch: (t, 0, 0)),
                # x stays VMEM-resident across node tiles (constant block index)
                pl.BlockSpec((n, e), lambda t, nch: (0, 0)),
                pl.BlockSpec((r, e, e_out), lambda t, nch: (0, 0, 0)),
            ],
            out_specs=pl.BlockSpec((tn, e_out), lambda t, nch: (t, 0)),
            scratch_shapes=[pltpu.VMEM((rows_per_tile, e), jnp.float32)],
        ),
        compiler_params=pltpu.CompilerParams(
            dimension_semantics=("parallel",),
            vmem_limit_bytes=vmem_limit),
    )
    # TODO(synk): if the (n, e) node matrix no longer fits VMEM, x must move to a
    # manual-DMA source (memory_space=pl.ANY + pltpu.make_async_copy per tile).

    def forward(x, conditional=None):
        if conditional is not None:
            x = x + conditional
        x_b = x.astype(jnp.bfloat16)
        out = gcn_call(nchunks_j, row_j, colT_j, val_j, x_b, w_j)
        return out[:, :e] if e_out != e else out

    # TODO(synk): bases decomposition (comps @ bases) and the 'attention'/'mlp'
    # unify variants are not implemented; this covers the module defaults
    # (bases=None, unify='sum').
    return forward


# ---------------------------------- main ----------------------------------

if __name__ == "__main__":
    n, emb, r = 16, 32, 3

    # deterministic synthetic relational graph: every node has 1 or 2 out-edges
    # per relation (variable degree exercises the 1/deg normalization).
    edges = {}
    for p in range(r):
        fr = list(range(n)) + [i for i in range(n) if i % 2 == 0]
        to = ([(i + p + 1) % n for i in range(n)]
              + [(i + 2 * p + 3) % n for i in range(n) if i % 2 == 0])
        edges[p] = (fr, to)

    key = jax.random.PRNGKey(0)
    kw, kx = jax.random.split(key)
    # xavier_uniform with relu gain, as in nn.init.xavier_uniform_(gain=sqrt(2))
    bound = math.sqrt(2.0) * math.sqrt(6.0 / (emb + emb))
    weights = jax.random.uniform(kw, (r, emb, emb), jnp.float32, -bound, bound)
    x = jax.random.normal(kx, (n, emb), jnp.float32)

    forward = jax.jit(make_gcn_forward(edges, n, emb, weights))
    out = jax.block_until_ready(forward(x))

    # pure-numpy reference of the torch GCN forward (structural sanity check)
    xx = np.asarray(x, np.float64)
    ww = np.asarray(weights, np.float64)
    h_ref = np.zeros((r, n, emb), np.float64)
    deg = np.zeros((r, n), np.float64)
    for p, (fr, t_) in edges.items():
        for f_, tt in zip(fr, t_):
            h_ref[p, f_] += xx[tt]
            deg[p, f_] += 1.0
    h_ref = h_ref / np.maximum(deg, 1.0)[..., None]
    ref = np.maximum(np.einsum("rih,rnh->nri", ww, h_ref).sum(axis=1), 0.0)

    out_np = np.asarray(out)
    assert out_np.shape == (n, emb), out_np.shape
    assert np.all(np.isfinite(out_np))
    # bf16 MXU inputs (x / one-hots / weights) with f32 accumulation -> ~1e-2 noise
    np.testing.assert_allclose(out_np, ref, rtol=5e-2, atol=7e-2)
    print("KERNEL_OK")
</pallas_src>

<mosaic_0001>
module attributes {stable_mosaic.version = 11 : i64} {
  func.func @_gcn_kernel(%arg0: i32, %arg1: memref<2xi32, #tpu.memory_space<smem>>, %arg2: memref<1x1x128xi32, #tpu.memory_space<vmem>>, %arg3: memref<1x128x1xi32, #tpu.memory_space<vmem>>, %arg4: memref<1x1x128xf32, #tpu.memory_space<vmem>>, %arg5: memref<16x32xbf16, #tpu.memory_space<vmem>>, %arg6: memref<3x32x128xbf16, #tpu.memory_space<vmem>>, %arg7: memref<8x128xf32, #tpu.memory_space<vmem>>, %arg8: memref<24x32xf32, #tpu.memory_space<vmem>>) attributes {dimension_semantics = [#tpu.dimension_semantics<parallel>], iteration_bounds = array<i64: 2>, scalar_prefetch = 1 : i64, scratch_operands = 1 : i64, tpu.core_type = #tpu.core_type<tc>, window_params = [{transform_indices = @transform_0, window_bounds = array<i64: 1, 1, 128>}, {transform_indices = @transform_1, window_bounds = array<i64: 1, 128, 1>}, {transform_indices = @transform_2, window_bounds = array<i64: 1, 1, 128>}, {pipeline_mode = #tpu.pipeline_mode<synchronous>, transform_indices = @transform_3, window_bounds = array<i64: 16, 32>}, {pipeline_mode = #tpu.pipeline_mode<synchronous>, transform_indices = @transform_4, window_bounds = array<i64: 3, 32, 128>}, {transform_indices = @transform_5, window_bounds = array<i64: 8, 128>}]} {
    %0 = arith.index_cast %arg0 : i32 to index
    %1 = memref.load %arg1[%0] : memref<2xi32, #tpu.memory_space<smem>>
    %c0 = arith.constant 0 : index
    %c0_0 = arith.constant 0 : index
    %2 = vector.load %arg5[%c0, %c0_0] : memref<16x32xbf16, #tpu.memory_space<vmem>>, vector<16x32xbf16>
    %cst = arith.constant 0.000000e+00 : f32
    %3 = vector.broadcast %cst : f32 to vector<24x32xf32>
    %c0_1 = arith.constant 0 : index
    %c0_2 = arith.constant 0 : index
    %4 = vector.load %arg8[%c0_1, %c0_2] : memref<24x32xf32, #tpu.memory_space<vmem>>, vector<24x32xf32>
    tpu.vector_store %arg8[%c0_1, %c0_2], %3 {strides = array<i32>} : memref<24x32xf32, #tpu.memory_space<vmem>>, vector<24x32xf32>,
    %c0_i32 = arith.constant 0 : i32
    %5 = arith.cmpi sgt, %1, %c0_i32 : i32
    %6 = arith.extui %5 : i1 to i32
    %c0_i32_3 = arith.constant 0 : i32
    %7 = arith.cmpi ne, %6, %c0_i32_3 : i32
    scf.if %7 {
      %c0_22 = arith.constant 0 : index
      %c0_23 = arith.constant 0 : index
      %c0_24 = arith.constant 0 : index
      %30 = vector.load %arg2[%c0_22, %c0_23, %c0_24] : memref<1x1x128xi32, #tpu.memory_space<vmem>>, vector<1x1x128xi32>
      %31 = vector.shape_cast %30 : vector<1x1x128xi32> to vector<1x128xi32>
      %c0_25 = arith.constant 0 : index
      %c0_26 = arith.constant 0 : index
      %c0_27 = arith.constant 0 : index
      %32 = vector.load %arg4[%c0_25, %c0_26, %c0_27] : memref<1x1x128xf32, #tpu.memory_space<vmem>>, vector<1x1x128xf32>
      %33 = vector.shape_cast %32 : vector<1x1x128xf32> to vector<1x128xf32>
      %c0_28 = arith.constant 0 : index
      %c0_29 = arith.constant 0 : index
      %c0_30 = arith.constant 0 : index
      %34 = vector.load %arg3[%c0_28, %c0_29, %c0_30] : memref<1x128x1xi32, #tpu.memory_space<vmem>>, vector<1x128x1xi32>
      %35 = vector.shape_cast %34 : vector<1x128x1xi32> to vector<128x1xi32>
      %36 = tpu.iota {dimensions = array<i32: 1>} : vector<128x16xi32>
      %37 = vector.broadcast %35 : vector<128x1xi32> to vector<128x16xi32>
      %38 = arith.cmpi eq, %36, %37 : vector<128x16xi32>
      %cst_31 = arith.constant 1.000000e+00 : f32
      %cst_32 = arith.constant 0.000000e+00 : f32
      %39 = vector.broadcast %cst_31 : f32 to vector<128x16xf32>
      %40 = vector.broadcast %cst_32 : f32 to vector<128x16xf32>
      %41 = arith.select %38, %39, %40 : vector<128x16xi1>, vector<128x16xf32>
      %42 = arith.truncf %41 : vector<128x16xf32> to vector<128x16xbf16>
      %cst_33 = arith.constant dense<0.000000e+00> : vector<128x32xf32>
      %43 = tpu.matmul %42, %2, %cst_33 {dimension_numbers = #tpu.dot_dimension_numbers<[1], [0], [0], [1], [0, 0, 1, 1], [], []>} : vector<128x16xbf16>, vector<16x32xbf16>, vector<128x32xf32> -> vector<128x32xf32>
      %44 = tpu.iota {dimensions = array<i32: 0>} : vector<24x128xi32>
      %45 = vector.broadcast %31 : vector<1x128xi32> to vector<24x128xi32>
      %46 = arith.cmpi eq, %44, %45 : vector<24x128xi32>
      %cst_34 = arith.constant 0.000000e+00 : f32
      %47 = vector.shape_cast %33 : vector<1x128xf32> to vector<1x128xf32>
      %48 = vector.broadcast %47 : vector<1x128xf32> to vector<24x128xf32>
      %49 = vector.broadcast %cst_34 : f32 to vector<24x128xf32>
      %50 = arith.select %46, %48, %49 : vector<24x128xi1>, vector<24x128xf32>
      %51 = arith.truncf %50 : vector<24x128xf32> to vector<24x128xbf16>
      %c0_35 = arith.constant 0 : index
      %c0_36 = arith.constant 0 : index
      %52 = vector.load %arg8[%c0_35, %c0_36] : memref<24x32xf32, #tpu.memory_space<vmem>>, vector<24x32xf32>
      %53 = arith.truncf %43 : vector<128x32xf32> to vector<128x32xbf16>
      %cst_37 = arith.constant dense<0.000000e+00> : vector<24x32xf32>
      %54 = tpu.matmul %51, %53, %cst_37 {dimension_numbers = #tpu.dot_dimension_numbers<[1], [0], [0], [1], [0, 0, 1, 1], [], []>} : vector<24x128xbf16>, vector<128x32xbf16>, vector<24x32xf32> -> vector<24x32xf32>
      %55 = arith.addf %52, %54 : vector<24x32xf32>
      %c0_38 = arith.constant 0 : index
      %c0_39 = arith.constant 0 : index
      %56 = vector.load %arg8[%c0_38, %c0_39] : memref<24x32xf32, #tpu.memory_space<vmem>>, vector<24x32xf32>
      tpu.vector_store %arg8[%c0_38, %c0_39], %55 {strides = array<i32>} : memref<24x32xf32, #tpu.memory_space<vmem>>, vector<24x32xf32>,
    } else {
    }
    %cst_4 = arith.constant 0.000000e+00 : f32
    %8 = vector.broadcast %cst_4 : f32 to vector<8x128xf32>
    %c0_5 = arith.constant 0 : index
    %c0_6 = arith.constant 0 : index
    %9 = vector.load %arg8[%c0_5, %c0_6] : memref<24x32xf32, #tpu.memory_space<vmem>>, vector<8x32xf32>
    %10 = arith.truncf %9 : vector<8x32xf32> to vector<8x32xbf16>
    %c0_7 = arith.constant 0 : index
    %c0_8 = arith.constant 0 : index
    %c0_9 = arith.constant 0 : index
    %11 = vector.load %arg6[%c0_7, %c0_8, %c0_9] : memref<3x32x128xbf16, #tpu.memory_space<vmem>>, vector<1x32x128xbf16>
    %12 = vector.shape_cast %11 : vector<1x32x128xbf16> to vector<32x128xbf16>
    %cst_10 = arith.constant dense<0.000000e+00> : vector<8x128xf32>
    %13 = tpu.matmul %10, %12, %cst_10 {dimension_numbers = #tpu.dot_dimension_numbers<[1], [0], [0], [1], [0, 0, 1, 1], [], []>} : vector<8x32xbf16>, vector<32x128xbf16>, vector<8x128xf32> -> vector<8x128xf32>
    %14 = arith.addf %8, %13 : vector<8x128xf32>
    %c8 = arith.constant 8 : index
    %c0_11 = arith.constant 0 : index
    %15 = vector.load %arg8[%c8, %c0_11] : memref<24x32xf32, #tpu.memory_space<vmem>>, vector<8x32xf32>
    %16 = arith.truncf %15 : vector<8x32xf32> to vector<8x32xbf16>
    %c1 = arith.constant 1 : index
    %c0_12 = arith.constant 0 : index
    %c0_13 = arith.constant 0 : index
    %17 = vector.load %arg6[%c1, %c0_12, %c0_13] : memref<3x32x128xbf16, #tpu.memory_space<vmem>>, vector<1x32x128xbf16>
    %18 = vector.shape_cast %17 : vector<1x32x128xbf16> to vector<32x128xbf16>
    %cst_14 = arith.constant dense<0.000000e+00> : vector<8x128xf32>
    %19 = tpu.matmul %16, %18, %cst_14 {dimension_numbers = #tpu.dot_dimension_numbers<[1], [0], [0], [1], [0, 0, 1, 1], [], []>} : vector<8x32xbf16>, vector<32x128xbf16>, vector<8x128xf32> -> vector<8x128xf32>
    %20 = arith.addf %14, %19 : vector<8x128xf32>
    %c16 = arith.constant 16 : index
    %c0_15 = arith.constant 0 : index
    %21 = vector.load %arg8[%c16, %c0_15] : memref<24x32xf32, #tpu.memory_space<vmem>>, vector<8x32xf32>
    %22 = arith.truncf %21 : vector<8x32xf32> to vector<8x32xbf16>
    %c2 = arith.constant 2 : index
    %c0_16 = arith.constant 0 : index
    %c0_17 = arith.constant 0 : index
    %23 = vector.load %arg6[%c2, %c0_16, %c0_17] : memref<3x32x128xbf16, #tpu.memory_space<vmem>>, vector<1x32x128xbf16>
    %24 = vector.shape_cast %23 : vector<1x32x128xbf16> to vector<32x128xbf16>
    %cst_18 = arith.constant dense<0.000000e+00> : vector<8x128xf32>
    %25 = tpu.matmul %22, %24, %cst_18 {dimension_numbers = #tpu.dot_dimension_numbers<[1], [0], [0], [1], [0, 0, 1, 1], [], []>} : vector<8x32xbf16>, vector<32x128xbf16>, vector<8x128xf32> -> vector<8x128xf32>
    %26 = arith.addf %20, %25 : vector<8x128xf32>
    %cst_19 = arith.constant 0.000000e+00 : f32
    %27 = vector.broadcast %cst_19 : f32 to vector<8x128xf32>
    %28 = arith.maximumf %26, %27 : vector<8x128xf32>
    %c0_20 = arith.constant 0 : index
    %c0_21 = arith.constant 0 : index
    %29 = vector.load %arg7[%c0_20, %c0_21] : memref<8x128xf32, #tpu.memory_space<vmem>>, vector<8x128xf32>
    tpu.vector_store %arg7[%c0_20, %c0_21], %28 {strides = array<i32>} : memref<8x128xf32, #tpu.memory_space<vmem>>, vector<8x128xf32>,
    return
  }
  func.func @transform_0(%arg0: i32, %arg1: memref<2xi32, #tpu.memory_space<smem>>) -> (i32, i32, i32) {
    %c0_i32 = arith.constant 0 : i32
    %c0_i32_0 = arith.constant 0 : i32
    %c0_i32_1 = arith.constant 0 : i32
    return %arg0, %c0_i32, %c0_i32_0 : i32, i32, i32
  }
  func.func @transform_1(%arg0: i32, %arg1: memref<2xi32, #tpu.memory_space<smem>>) -> (i32, i32, i32) {
    %c0_i32 = arith.constant 0 : i32
    %c0_i32_0 = arith.constant 0 : i32
    %c0_i32_1 = arith.constant 0 : i32
    return %arg0, %c0_i32, %c0_i32_0 : i32, i32, i32
  }
  func.func @transform_2(%arg0: i32, %arg1: memref<2xi32, #tpu.memory_space<smem>>) -> (i32, i32, i32) {
    %c0_i32 = arith.constant 0 : i32
    %c0_i32_0 = arith.constant 0 : i32
    %c0_i32_1 = arith.constant 0 : i32
    return %arg0, %c0_i32, %c0_i32_0 : i32, i32, i32
  }
  func.func @transform_3(%arg0: i32, %arg1: memref<2xi32, #tpu.memory_space<smem>>) -> (i32, i32) {
    %c0_i32 = arith.constant 0 : i32
    %c0_i32_0 = arith.constant 0 : i32
    %c0_i32_1 = arith.constant 0 : i32
    return %c0_i32, %c0_i32_0 : i32, i32
  }
  func.func @transform_4(%arg0: i32, %arg1: memref<2xi32, #tpu.memory_space<smem>>) -> (i32, i32, i32) {
    %c0_i32 = arith.constant 0 : i32
    %c0_i32_0 = arith.constant 0 : i32
    %c0_i32_1 = arith.constant 0 : i32
    %c0_i32_2 = arith.constant 0 : i32
    return %c0_i32, %c0_i32_0, %c0_i32_1 : i32, i32, i32
  }
  func.func @transform_5(%arg0: i32, %arg1: memref<2xi32, #tpu.memory_space<smem>>) -> (i32, i32) {
    %c0_i32 = arith.constant 0 : i32
    %c0_i32_0 = arith.constant 0 : i32
    return %arg0, %c0_i32 : i32, i32
  }
}

</mosaic_0001>

<llo_original>
// kernel: forward.1
$region0: #{forward.1}
  #allocation0 [shape = 'u32[]', space=smem, size = 0x4, offset = 0x4, fixed_abs, tag = 'smem constant byte address 0x4 - core index']
  #allocation1 [shape = 'u32[72,128]{1,0:T(1,128)}', space=vmem, size = 0x9000, scoped, tag = 'internal scratch']
  #allocation2 [shape = 'f32[24,32]{1,0:T(8,128)}', space=vmem, size = 0x3000, scoped, tag = 'scratch operand']
  #allocation3 [shape = 's32[1]{0}', space=sflag, size = 0x4, scoped, tag = 'scoped memory for forward.1']
  #allocation4 [shape = 'u8[512]{0}', space=smem, size = 0x200, scoped, tag = 'prefetched SMEM operand 0']
  %s0 = inlined_call_operand.vmem [shape: s32[2], index: 0, kind: input, shape index: {}]
  %s1 = inlined_call_operand.vmem [shape: s32[2,1,128], index: 1, kind: input, shape index: {}]
  %s2 = inlined_call_operand.hbm [shape: s32[2,128,1], index: 2, kind: input, shape index: {}]
  %s3 = inlined_call_operand.vmem [shape: f32[2,1,128], index: 3, kind: input, shape index: {}]
  %s4 = inlined_call_operand.vmem [shape: bf16[16,32], index: 4, kind: input, shape index: {}]
  %s5 = inlined_call_operand.hbm [shape: bf16[3,32,128], index: 5, kind: input, shape index: {}]
  %s6 = inlined_call_operand.hbm [shape: f32[16,128], index: 6, kind: output, shape index: {}]
  %s7 = sld [smem:[#allocation0]]
  $region65: #{forward.1} parent=0
    _
  %s9 = ssub.s32 1, %s7
  %s10 = scalar_select 0, %s9, %s7
  %s12 = sshll.u32 %s0, 4
  %s13 = int_to_ptr.vmem [resolvable:$true] %s12
  %15 = dma.vmem_to_smem %s13, 16, [#allocation4], [#allocation3]
  %17 = dma.done [#allocation3], 16
  %18 = sfence
  $region1: #{forward.1} parent=0
    #allocation5 [shape = 'u8[131072]{0}', space=vmem, size = 0x20000, scoped, tag = 'input window, operand 2']
    #allocation6 [shape = 's32[2]{0}', space=sflag, size = 0x8, scoped, tag = 'scoped memory for forward.1']
    #allocation7 [shape = 's32[2]{0}', space=sflag, size = 0x8, scoped, tag = 'scoped memory for forward.1']
    #allocation8 [shape = 'u8[24576]{0}', space=vmem, size = 0x6000, scoped, tag = 'input window, operand 5, single buffered']
    #allocation9 [shape = 's32[1]{0}', space=sflag, size = 0x4, scoped, tag = 'scoped memory for forward.1']
    #allocation10 [shape = 'u8[8192]{0}', space=vmem, size = 0x2000, scoped, tag = 'output window, operand 0']
    %19 = vsyncpa [#allocation6], 0
    %s20 = scalar_lea.sflag [#allocation6], 1
    %21 = vsyncpa %s20, 0
    %22 = vsyncpa [#allocation9], 0
    %23 = vsyncpa [#allocation7], 0
    %s24 = scalar_lea.sflag [#allocation7], 1
    %25 = vsyncpa %s24, 0
    loop: start=0, step=1, limit=4
    $region2: #{forward.1} parent=1 // loop_pre_header
      _
    $region3: #{forward.1} parent=1 // loop_header
      %s27 = sphi 0, %s31
      %p28 = scmp.ge.s32.totalorder %s27, 4
      %s37 = sphi 0, %s39
      %s40 = sphi 0, %s37
      %s41 = sphi 0, %s40
      %s57 = sphi 0, %s41
      %s63 = sphi 0, %s65
      %s66 = sphi 0, %s63
      %s67 = sphi 0, %s66
      %s83 = sphi 0, %s67
      %s89 = sphi 0, %s91
      %s92 = sphi 0, %s89
      %s93 = sphi 0, %s92
      %s109 = sphi 0, %s93
      %s113 = sphi 0, %s113
      %s115 = sphi 0, %s113
      %s116 = sphi 0, %s115
      %s130 = sphi 0, %s116
      %s134 = sphi 0, %s134
      %s136 = sphi 0, %s134
      %s137 = sphi 0, %s136
      %s151 = sphi 0, %s137
      %s157 = sphi 0, %s159
      %s160 = sphi 0, %s157
      %s161 = sphi 0, %s160
      %s177 = sphi 0, %s161
    $region4: #{forward.1} parent=1 // loop_header_branch
      %30 = sbr.rel (%p28) target = $region8
    $region5: #{forward.1} parent=1 // loop_body
      %s32 = ssub.s32 %s27, 1
      %s33 = ssub.s32 %s27, 2
      %s34 = sadd.s32 %s27, 1
      %s35 = ssub.s32 %s27, %s34
      %p36 = scmp.eq.s32.totalorder %s35, 0
      %s38 = sadd.s32 %s37, 1
      %s39 = scalar_select %p36, %s37, %s38
      %p42 = pneg %p36
      %p43 = scmp.eq.s32.totalorder %s27, 1
      %p44 = por %p42, %p43
      %p45 = scmp.ne.s32.totalorder %s37, %s40
      %p46 = scmp.eq.s32.totalorder %s27, 0
      %p47 = por %p45, %p46
      %p48 = scmp.ne.s32.totalorder %s37, %s40
      %p49 = scmp.eq.s32.totalorder %s32, 1
      %p50 = por %p48, %p49
      %p51 = scmp.ne.s32.totalorder %s40, %s41
      %p52 = scmp.eq.s32.totalorder %s32, 0
      %p53 = por %p51, %p52
      %p54 = scmp.ne.s32.totalorder %s40, %s41
      %p55 = scmp.eq.s32.totalorder %s33, 1
      %p56 = por %p54, %p55
      %p58 = scmp.ne.s32.totalorder %s41, %s57
      %p59 = scmp.eq.s32.totalorder %s33, 0
      %p60 = por %p58, %p59
      %s61 = ssub.s32 %s27, %s34
      %p62 = scmp.eq.s32.totalorder %s61, 0
      %s64 = sadd.s32 %s63, 1
      %s65 = scalar_select %p62, %s63, %s64
      %p68 = pneg %p62
      %p69 = scmp.eq.s32.totalorder %s27, 1
      %p70 = por %p68, %p69
      %p71 = scmp.ne.s32.totalorder %s63, %s66
      %p72 = scmp.eq.s32.totalorder %s27, 0
      %p73 = por %p71, %p72
      %p74 = scmp.ne.s32.totalorder %s63, %s66
      %p75 = scmp.eq.s32.totalorder %s32, 1
      %p76 = por %p74, %p75
      %p77 = scmp.ne.s32.totalorder %s66, %s67
      %p78 = scmp.eq.s32.totalorder %s32, 0
      %p79 = por %p77, %p78
      %p80 = scmp.ne.s32.totalorder %s66, %s67
      %p81 = scmp.eq.s32.totalorder %s33, 1
      %p82 = por %p80, %p81
      %p84 = scmp.ne.s32.totalorder %s67, %s83
      %p85 = scmp.eq.s32.totalorder %s33, 0
      %p86 = por %p84, %p85
      %s87 = ssub.s32 %s27, %s34
      %p88 = scmp.eq.s32.totalorder %s87, 0
      %s90 = sadd.s32 %s89, 1
      %s91 = scalar_select %p88, %s89, %s90
      %p94 = pneg %p88
      %p95 = scmp.eq.s32.totalorder %s27, 1
      %p96 = por %p94, %p95
      %p97 = scmp.ne.s32.totalorder %s89, %s92
      %p98 = scmp.eq.s32.totalorder %s27, 0
      %p99 = por %p97, %p98
      %p100 = scmp.ne.s32.totalorder %s89, %s92
      %p101 = scmp.eq.s32.totalorder %s32, 1
      %p102 = por %p100, %p101
      %p103 = scmp.ne.s32.totalorder %s92, %s93
      %p104 = scmp.eq.s32.totalorder %s32, 0
      %p105 = por %p103, %p104
      %p106 = scmp.ne.s32.totalorder %s92, %s93
      %p107 = scmp.eq.s32.totalorder %s33, 1
      %p108 = por %p106, %p107
      %p110 = scmp.ne.s32.totalorder %s93, %s109
      %p111 = scmp.eq.s32.totalorder %s33, 0
      %p112 = por %p110, %p111
      %s114 = sadd.s32 %s113, 1
      %p117 = scmp.eq.s32.totalorder %s27, 1
      %p118 = scmp.ne.s32.totalorder %s113, %s115
      %p119 = scmp.eq.s32.totalorder %s27, 0
      %p120 = por %p118, %p119
      %p121 = scmp.ne.s32.totalorder %s113, %s115
      %p122 = scmp.eq.s32.totalorder %s32, 1
      %p123 = por %p121, %p122
      %p124 = scmp.ne.s32.totalorder %s115, %s116
      %p125 = scmp.eq.s32.totalorder %s32, 0
      %p126 = por %p124, %p125
      %p127 = scmp.ne.s32.totalorder %s115, %s116
      %p128 = scmp.eq.s32.totalorder %s33, 1
      %p129 = por %p127, %p128
      %p131 = scmp.ne.s32.totalorder %s116, %s130
      %p132 = scmp.eq.s32.totalorder %s33, 0
      %p133 = por %p131, %p132
      %s135 = sadd.s32 %s134, 1
      %p138 = scmp.eq.s32.totalorder %s27, 1
      %p139 = scmp.ne.s32.totalorder %s134, %s136
      %p140 = scmp.eq.s32.totalorder %s27, 0
      %p141 = por %p139, %p140
      %p142 = scmp.ne.s32.totalorder %s134, %s136
      %p143 = scmp.eq.s32.totalorder %s32, 1
      %p144 = por %p142, %p143
      %p145 = scmp.ne.s32.totalorder %s136, %s137
      %p146 = scmp.eq.s32.totalorder %s32, 0
      %p147 = por %p145, %p146
      %p148 = scmp.ne.s32.totalorder %s136, %s137
      %p149 = scmp.eq.s32.totalorder %s33, 1
      %p150 = por %p148, %p149
      %p152 = scmp.ne.s32.totalorder %s137, %s151
      %p153 = scmp.eq.s32.totalorder %s33, 0
      %p154 = por %p152, %p153
      %s155 = ssub.s32 %s27, %s34
      %p156 = scmp.eq.s32.totalorder %s155, 0
      %s158 = sadd.s32 %s157, 1
      %s159 = scalar_select %p156, %s157, %s158
      %p162 = pneg %p156
      %p163 = scmp.eq.s32.totalorder %s27, 1
      %p164 = por %p162, %p163
      %p165 = scmp.ne.s32.totalorder %s157, %s160
      %p166 = scmp.eq.s32.totalorder %s27, 0
      %p167 = por %p165, %p166
      %p168 = scmp.ne.s32.totalorder %s157, %s160
      %p169 = scmp.eq.s32.totalorder %s32, 1
      %p170 = por %p168, %p169
      %p171 = scmp.ne.s32.totalorder %s160, %s161
      %p172 = scmp.eq.s32.totalorder %s32, 0
      %p173 = por %p171, %p172
      %p174 = scmp.ne.s32.totalorder %s160, %s161
      %p175 = scmp.eq.s32.totalorder %s33, 1
      %p176 = por %p174, %p175
      %p178 = scmp.ne.s32.totalorder %s161, %s177
      %p179 = scmp.eq.s32.totalorder %s33, 0
      %p180 = por %p178, %p179
      %p181 = scmp.le.s32.totalorder 1, %s27
      %p182 = scmp.lt.s32.totalorder %s27, 3
      %p183 = pnand %p181, %p182
      %p184 = pneg %p183
      // Predicated region
      $region9: #{forward.1} parent=5 // pred_check
        _
      $region10: #{forward.1} parent=5 // pred_check_branch
        %186 = sbr.rel (%p183) target = $region12
      $region11: #{forward.1} parent=5 // pred_region
        %s187 = ssub.s32 %s27, 1
        // Predicated region
        $region13: #{forward.1} parent=11 // pred_check
          %p188 = pneg %p126
        $region14: #{forward.1} parent=11 // pred_check_branch
          %190 = sbr.rel (%p188) target = $region16
        $region15: #{forward.1} parent=11 // pred_region
          _
        $region16: #{forward.1} parent=11 // pred_fallthru
          _
        // Predicated region
        $region17: #{forward.1} parent=11 // pred_check
          %p191 = pneg %p147
        $region18: #{forward.1} parent=11 // pred_check_branch
          %193 = sbr.rel (%p191) target = $region20
        $region19: #{forward.1} parent=11 // pred_region
          %195 = vsyncadd [#allocation9], 0
          %s196 = sshll.u32 %s5, 4
          %s197 = int_to_ptr.hbm [resolvable:$true] %s196
          %s198 = sshll.u32 [#allocation8], 4
          %s199 = int_to_ptr.vmem [resolvable:$true] %s198
          %204 = dma.hbm_to_vmem [thread:$0]  %s197, 768, %s199, [#allocation9], 64, 64, 4
        $region20: #{forward.1} parent=11 // pred_fallthru
          _
      $region12: #{forward.1} parent=5 // pred_fallthru
        _
      %p205 = scmp.lt.s32.totalorder %s27, 2
      // Predicated region
      $region21: #{forward.1} parent=5 // pred_check
        %p206 = pneg %p205
      $region22: #{forward.1} parent=5 // pred_check_branch
        %208 = sbr.rel (%p206) target = $region24
      $region23: #{forward.1} parent=5 // pred_region
        // Predicated region
        $region25: #{forward.1} parent=23 // pred_check
          %p209 = pneg %p47
        $region26: #{forward.1} parent=23 // pred_check_branch
          %211 = sbr.rel (%p209) target = $region28
        $region27: #{forward.1} parent=23 // pred_region
          %p212 = scmp.lt.s32.totalorder %s27, 1
          %s213 = scalar_select %p212, %s27, 1
          %s214 = scalar_lea.vmem %s1, %s213
        $region28: #{forward.1} parent=23 // pred_fallthru
          _
        // Predicated region
        $region29: #{forward.1} parent=23 // pred_check
          %p215 = pneg %p73
        $region30: #{forward.1} parent=23 // pred_check_branch
          %217 = sbr.rel (%p215) target = $region32
        $region31: #{forward.1} parent=23 // pred_region
          %s218 = sand.u32 %s63, 1
          %s219 = scalar_lea.sflag [#allocation6], %s218
          %s220 = sand.u32 %s63, 1
          %s221 = smul.addr %s220, 128
          %s222 = scalar_lea.vmem [#allocation5], %s221
          %224 = vsyncadd %s219, 0
          %s225 = smul.addr %s27, 16
          %s226 = smul.addr %s225, 8
          %s227 = scalar_lea.hbm %s2, %s226
          %s228 = sshll.u32 %s227, 4
          %s229 = int_to_ptr.hbm [resolvable:$true] %s228
          %s230 = sshll.u32 %s222, 4
          %s231 = int_to_ptr.vmem [resolvable:$true] %s230
          %236 = dma.hbm_to_vmem [thread:$0]  %s229, 2048, %s231, %s219, 128, 128, 8
        $region32: #{forward.1} parent=23 // pred_fallthru
          _
        // Predicated region
        $region33: #{forward.1} parent=23 // pred_check
          %p237 = pneg %p99
        $region34: #{forward.1} parent=23 // pred_check_branch
          %239 = sbr.rel (%p237) target = $region36
        $region35: #{forward.1} parent=23 // pred_region
          %p240 = scmp.lt.s32.totalorder %s27, 1
          %s241 = scalar_select %p240, %s27, 1
          %s242 = scalar_lea.vmem %s3, %s241
        $region36: #{forward.1} parent=23 // pred_fallthru
          _
      $region24: #{forward.1} parent=5 // pred_fallthru
        _
      %p243 = scmp.le.s32.totalorder 1, %s27
      %p244 = scmp.lt.s32.totalorder %s27, 3
      %p245 = pnand %p243, %p244
      %p246 = pneg %p245
      // Predicated region
      $region37: #{forward.1} parent=5 // pred_check
        _
      $region38: #{forward.1} parent=5 // pred_check_branch
        %248 = sbr.rel (%p245) target = $region40
      $region39: #{forward.1} parent=5 // pred_region
        %s249 = ssub.s32 %s27, 1
        %s250 = sand.u32 %s66, 1
        %s251 = scalar_lea.sflag [#allocation6], %s250
        %s252 = sand.u32 %s66, 1
        %s253 = smul.addr %s252, 128
        %s254 = scalar_lea.vmem [#allocation5], %s253
        // Predicated region
        $region41: #{forward.1} parent=39 // pred_check
          %p255 = pneg %p79
        $region42: #{forward.1} parent=39 // pred_check_branch
          %257 = sbr.rel (%p255) target = $region44
        $region43: #{forward.1} parent=39 // pred_region
          %259 = dma.done %s251, 2048
        $region44: #{forward.1} parent=39 // pred_fallthru
          _
        // Predicated region
        $region45: #{forward.1} parent=39 // pred_check
          %p260 = pneg %p147
        $region46: #{forward.1} parent=39 // pred_check_branch
          %262 = sbr.rel (%p260) target = $region48
        $region47: #{forward.1} parent=39 // pred_region
          %264 = dma.done [#allocation9], 768
        $region48: #{forward.1} parent=39 // pred_fallthru
          _
        %p265 = scmp.lt.s32.totalorder %s32, 1
        %s266 = scalar_select %p265, %s32, 1
        %s267 = scalar_lea.vmem %s1, %s266
        %p268 = pneg %p53
        %p269 = pneg %p50
        %s270 = sand.u32 %s66, 1
        %s271 = scalar_lea.sflag [#allocation6], %s270
        %s272 = sand.u32 %s66, 1
        %s273 = smul.addr %s272, 128
        %s274 = scalar_lea.vmem [#allocation5], %s273
        %p275 = pneg %p79
        %p276 = pneg %p76
        %p277 = scmp.lt.s32.totalorder %s32, 1
        %s278 = scalar_select %p277, %s32, 1
        %s279 = scalar_lea.vmem %s3, %s278
        %p280 = pneg %p105
        %p281 = pneg %p102
        %p282 = pneg %p126
        %p283 = pneg %p123
        %p284 = pneg %p147
        %p285 = pneg %p144
        %p286 = pneg %p173
        %p287 = pneg %p170
        %s288 = sand.u32 %s160, 1
        %s289 = scalar_lea.sflag [#allocation7], %s288
        %s290 = sand.u32 %s160, 1
        %s291 = smul.addr %s290, 8
        %s292 = scalar_lea.vmem [#allocation10], %s291
        %p293 = scmp.lt.s32.totalorder %s32, 1
        %s294 = scalar_select %p293, %s32, 1
        %s295 = scalar_lea.vmem %s1, %s294
        %p296 = scmp.lt.s32.totalorder %s32, 1
        %s297 = scalar_select %p296, %s32, 1
        %s298 = scalar_lea.vmem %s3, %s297
        %s300 = sld [smem:[#allocation4 + %s32]]
        %v301 = vld [vmem:[%s4] sm:$0xf]
        %v302 = vld [vmem:[%s4 + $0x4] sm:$0xf]
        %vm303 = vcmask 261120
        %304 = vst.msk [vmem:[#allocation2] sm:$0xff] %vm303, 0.0
        %305 = vst.msk [vmem:[#allocation2 + $0x8] sm:$0xff] %vm303, 0.0
        %306 = vst.msk [vmem:[#allocation2 + $0x10] sm:$0xff] %vm303, 0.0
        %p307 = scmp.gt.s32.totalorder %s300, 0
        // Predicated region
        $region49: #{forward.1} parent=39 // pred_check
          %p308 = pneg %p307
        $region50: #{forward.1} parent=39 // pred_check_branch
          %310 = sbr.rel (%p308) target = $region52
        $region51: #{forward.1} parent=39 // pred_region
          %v311 = vld [vmem:[%s295] sm:$0x1]
          %v312 = vld [vmem:[%s298] sm:$0x1]
          %v313 = vld [vmem:[%s254] sm:$0xff]
          %v314 = vld [vmem:[%s254 + $0x8] sm:$0xff]
          %v315 = vld [vmem:[%s254 + $0x10] sm:$0xff]
          %v316 = vld [vmem:[%s254 + $0x18] sm:$0xff]
          %v317 = vld [vmem:[%s254 + $0x20] sm:$0xff]
          %v318 = vld [vmem:[%s254 + $0x28] sm:$0xff]
          %v319 = vld [vmem:[%s254 + $0x30] sm:$0xff]
          %v320 = vld [vmem:[%s254 + $0x38] sm:$0xff]
          %v321 = vld [vmem:[%s254 + $0x40] sm:$0xff]
          %v322 = vld [vmem:[%s254 + $0x48] sm:$0xff]
          %v323 = vld [vmem:[%s254 + $0x50] sm:$0xff]
          %v324 = vld [vmem:[%s254 + $0x58] sm:$0xff]
          %v325 = vld [vmem:[%s254 + $0x60] sm:$0xff]
          %v326 = vld [vmem:[%s254 + $0x68] sm:$0xff]
          %v327 = vld [vmem:[%s254 + $0x70] sm:$0xff]
          %v328 = vld [vmem:[%s254 + $0x78] sm:$0xff]
          %v329 = vlaneseq
          %v330 = vand.u32 %v329, 127
          %331 = vset.pattern.permute.xlu0 0
          %332 = vperm.xlu0 %331, %v313
          %v333 = vpop.permute.xlu0 %332
          %334 = vset.pattern.permute.xlu0 0
          %335 = vperm.xlu0 %334, %v314
          %v336 = vpop.permute.xlu0 %335
          %337 = vset.pattern.permute.xlu0 0
          %338 = vperm.xlu0 %337, %v315
          %v339 = vpop.permute.xlu0 %338
          %340 = vset.pattern.permute.xlu0 0
          %341 = vperm.xlu0 %340, %v316
          %v342 = vpop.permute.xlu0 %341
          %343 = vset.pattern.permute.xlu0 0
          %344 = vperm.xlu0 %343, %v317
          %v345 = vpop.permute.xlu0 %344
          %346 = vset.pattern.permute.xlu0 0
          %347 = vperm.xlu0 %346, %v318
          %v348 = vpop.permute.xlu0 %347
          %349 = vset.pattern.permute.xlu0 0
          %350 = vperm.xlu0 %349, %v319
          %v351 = vpop.permute.xlu0 %350
          %352 = vset.pattern.permute.xlu0 0
          %353 = vperm.xlu0 %352, %v320
          %v354 = vpop.permute.xlu0 %353
          %355 = vset.pattern.permute.xlu0 0
          %356 = vperm.xlu0 %355, %v321
          %v357 = vpop.permute.xlu0 %356
          %358 = vset.pattern.permute.xlu0 0
          %359 = vperm.xlu0 %358, %v322
          %v360 = vpop.permute.xlu0 %359
          %361 = vset.pattern.permute.xlu0 0
          %362 = vperm.xlu0 %361, %v323
          %v363 = vpop.permute.xlu0 %362
          %364 = vset.pattern.permute.xlu0 0
          %365 = vperm.xlu0 %364, %v324
          %v366 = vpop.permute.xlu0 %365
          %367 = vset.pattern.permute.xlu0 0
          %368 = vperm.xlu0 %367, %v325
          %v369 = vpop.permute.xlu0 %368
          %370 = vset.pattern.permute.xlu0 0
          %371 = vperm.xlu0 %370, %v326
          %v372 = vpop.permute.xlu0 %371
          %373 = vset.pattern.permute.xlu0 0
          %374 = vperm.xlu0 %373, %v327
          %v375 = vpop.permute.xlu0 %374
          %376 = vset.pattern.permute.xlu0 0
          %377 = vperm.xlu0 %376, %v328
          %v378 = vpop.permute.xlu0 %377
          %vm379 = vcmp.eq.s32.totalorder %v330, %v333
          %vm380 = vcmp.eq.s32.totalorder %v330, %v336
          %vm381 = vcmp.eq.s32.totalorder %v330, %v339
          %vm382 = vcmp.eq.s32.totalorder %v330, %v342
          %vm383 = vcmp.eq.s32.totalorder %v330, %v345
          %vm384 = vcmp.eq.s32.totalorder %v330, %v348
          %vm385 = vcmp.eq.s32.totalorder %v330, %v351
          %vm386 = vcmp.eq.s32.totalorder %v330, %v354
          %vm387 = vcmp.eq.s32.totalorder %v330, %v357
          %vm388 = vcmp.eq.s32.totalorder %v330, %v360
          %vm389 = vcmp.eq.s32.totalorder %v330, %v363
          %vm390 = vcmp.eq.s32.totalorder %v330, %v366
          %vm391 = vcmp.eq.s32.totalorder %v330, %v369
          %vm392 = vcmp.eq.s32.totalorder %v330, %v372
          %vm393 = vcmp.eq.s32.totalorder %v330, %v375
          %vm394 = vcmp.eq.s32.totalorder %v330, %v378
          %v395 = vsel %vm379, 1.0, 0.0
          %v396 = vsel %vm380, 1.0, 0.0
          %v397 = vsel %vm381, 1.0, 0.0
          %v398 = vsel %vm382, 1.0, 0.0
          %v399 = vsel %vm383, 1.0, 0.0
          %v400 = vsel %vm384, 1.0, 0.0
          %v401 = vsel %vm385, 1.0, 0.0
          %v402 = vsel %vm386, 1.0, 0.0
          %v403 = vsel %vm387, 1.0, 0.0
          %v404 = vsel %vm388, 1.0, 0.0
          %v405 = vsel %vm389, 1.0, 0.0
          %v406 = vsel %vm390, 1.0, 0.0
          %v407 = vsel %vm391, 1.0, 0.0
          %v408 = vsel %vm392, 1.0, 0.0
          %v409 = vsel %vm393, 1.0, 0.0
          %v410 = vsel %vm394, 1.0, 0.0
          %v411 = vpack.c.bf16 %v396, %v395
          %v412 = vpack.c.bf16 %v398, %v397
          %v413 = vpack.c.bf16 %v400, %v399
          %v414 = vpack.c.bf16 %v402, %v401
          %v415 = vpack.c.bf16 %v404, %v403
          %v416 = vpack.c.bf16 %v406, %v405
          %v417 = vpack.c.bf16 %v408, %v407
          %v418 = vpack.c.bf16 %v410, %v409
          %v421 = vunpack.c.l.b16 %v301
          %v422 = vunpack.c.l.b16 %v302
          %v423 = vpack.c.b16 %v422, %v421
          %vm425 = vcmask 130048
          %v427 = vsel %vm425, %v411, 0
          %v430 = vsel %vm425, %v412, 0
          %v433 = vsel %vm425, %v413, 0
          %v436 = vsel %vm425, %v414, 0
          %v439 = vsel %vm425, %v415, 0
          %v442 = vsel %vm425, %v416, 0
          %v445 = vsel %vm425, %v417, 0
          %v448 = vsel %vm425, %v418, 0
          %450 = vmatpush.bf16.msra.mxu0 0
          %451 = vmatpush.bf16.msra.mxu0 0
          %452 = vmatpush.bf16.msra.mxu0 0
          %453 = vmatpush.bf16.msra.mxu0 0
          %454 = vmatpush.bf16.msra.mxu0 0
          %455 = vmatpush.bf16.msra.mxu0 0
          %456 = vmatpush.bf16.msra.mxu0 0
          %457 = vmatpush.bf16.msra.mxu0 %v423
          %458 = vmatmul.bf16.gmra.mxu0 %v427
          %v459 = vpop.f32.mrf.mxu0
          %v460 = vadd.f32 0.0, %v459
          %v461 = vpop.f32.mrf.mxu0
          %v462 = vadd.f32 0.0, %v461
          %463 = vmatmul.bf16.gmra.mxu0 %v430
          %v464 = vpop.f32.mrf.mxu0
          %v465 = vadd.f32 0.0, %v464
          %v466 = vpop.f32.mrf.mxu0
          %v467 = vadd.f32 0.0, %v466
          %468 = vmatmul.bf16.gmra.mxu0 %v433
          %v469 = vpop.f32.mrf.mxu0
          %v470 = vadd.f32 0.0, %v469
          %v471 = vpop.f32.mrf.mxu0
          %v472 = vadd.f32 0.0, %v471
          %473 = vmatmul.bf16.gmra.mxu0 %v436
          %v474 = vpop.f32.mrf.mxu0
          %v475 = vadd.f32 0.0, %v474
          %v476 = vpop.f32.mrf.mxu0
          %v477 = vadd.f32 0.0, %v476
          %478 = vmatmul.bf16.gmra.mxu0 %v439
          %v479 = vpop.f32.mrf.mxu0
          %v480 = vadd.f32 0.0, %v479
          %v481 = vpop.f32.mrf.mxu0
          %v482 = vadd.f32 0.0, %v481
          %483 = vmatmul.bf16.gmra.mxu0 %v442
          %v484 = vpop.f32.mrf.mxu0
          %v485 = vadd.f32 0.0, %v484
          %v486 = vpop.f32.mrf.mxu0
          %v487 = vadd.f32 0.0, %v486
          %488 = vmatmul.bf16.gmra.mxu0 %v445
          %v489 = vpop.f32.mrf.mxu0
          %v490 = vadd.f32 0.0, %v489
          %v491 = vpop.f32.mrf.mxu0
          %v492 = vadd.f32 0.0, %v491
          %493 = vmatmul.bf16.gmra.mxu0 %v448
          %v494 = vpop.f32.mrf.mxu0
          %v495 = vadd.f32 0.0, %v494
          %v496 = vpop.f32.mrf.mxu0
          %v497 = vadd.f32 0.0, %v496
          %498 = vdwg.mxu0
          %v499 = vlaneseq
          %v500 = vshrl.u32 %v499, 7
          %v501 = vadd.s32 %v500, 8
          %v502 = vadd.s32 %v500, 16
          %v503 = vperm.slane %v311, 0
          %vm504 = vcmp.eq.s32.totalorder %v500, %v503
          %vm505 = vcmp.eq.s32.totalorder %v501, %v503
          %vm506 = vcmp.eq.s32.totalorder %v502, %v503
          %v508 = vperm.slane %v312, 0
          %v510 = vsel %vm504, %v508, 0.0
          %v511 = vsel %vm505, %v508, 0.0
          %v512 = vsel %vm506, %v508, 0.0
          %v513 = vpack.c.bf16 %v511, %v510
          %v514 = vpack.c.bf16 %v512, %v512
          %v515 = vld [vmem:[#allocation2] sm:$0xff]
          %v516 = vld [vmem:[#allocation2 + $0x8] sm:$0xff]
          %v517 = vld [vmem:[#allocation2 + $0x10] sm:$0xff]
          %v518 = vpack.c.bf16 %v462, %v460
          %v519 = vpack.c.bf16 %v467, %v465
          %v520 = vpack.c.bf16 %v472, %v470
          %v521 = vpack.c.bf16 %v477, %v475
          %v522 = vpack.c.bf16 %v482, %v480
          %v523 = vpack.c.bf16 %v487, %v485
          %v524 = vpack.c.bf16 %v492, %v490
          %v525 = vpack.c.bf16 %v497, %v495
          %526 = vmatpush.bf16.msra.mxu0 %v525
          %527 = vmatpush.bf16.msra.mxu0 %v524
          %528 = vmatpush.bf16.msra.mxu0 %v523
          %529 = vmatpush.bf16.msra.mxu0 %v522
          %530 = vmatpush.bf16.msra.mxu0 %v521
          %531 = vmatpush.bf16.msra.mxu0 %v520
          %532 = vmatpush.bf16.msra.mxu0 %v519
          %533 = vmatpush.bf16.msra.mxu0 %v518
          %534 = vmatmul.bf16.gmra.mxu0 %v513
          %v535 = vpop.f32.mrf.mxu0
          %v536 = vadd.f32 0.0, %v535
          %v537 = vpop.f32.mrf.mxu0
          %v538 = vadd.f32 0.0, %v537
          %539 = vmatmul.bf16.gmra.mxu0 %v514
          %v540 = vpop.f32.mrf.mxu0
          %v541 = vadd.f32 0.0, %v540
          %v542 = vpop.f32.mrf.mxu0
          %543 = vdwg.mxu0
          %v544 = vadd.f32 %v515, %v536
          %v545 = vadd.f32 %v516, %v538
          %v546 = vadd.f32 %v517, %v541
          %547 = vst.msk [vmem:[#allocation2] sm:$0xff] %vm303, %v544
          %548 = vst.msk [vmem:[#allocation2 + $0x8] sm:$0xff] %vm303, %v545
          %549 = vst.msk [vmem:[#allocation2 + $0x10] sm:$0xff] %vm303, %v546
        $region52: #{forward.1} parent=39 // pred_fallthru
          _
        %v550 = vld [vmem:[#allocation2] sm:$0xff]
        %v551 = vpack.c.bf16 %v550, %v550
        %v552 = vld [vmem:[#allocation8] sm:$0xf]
        %v553 = vld [vmem:[#allocation8 + $0x4] sm:$0xf]
        %v554 = vld [vmem:[#allocation8 + $0x8] sm:$0xf]
        %v555 = vld [vmem:[#allocation8 + $0xc] sm:$0xf]
        %v556 = vld [vmem:[#allocation2 + $0x8] sm:$0xff]
        %v557 = vpack.c.bf16 %v556, %v556
        %s558 = scalar_lea.vmem [#allocation8], 16
        %v559 = vld [vmem:[%s558] sm:$0xf]
        %v560 = vld [vmem:[%s558 + $0x4] sm:$0xf]
        %v561 = vld [vmem:[%s558 + $0x8] sm:$0xf]
        %v562 = vld [vmem:[%s558 + $0xc] sm:$0xf]
        %v567 = vunpack.c.l.b16 %v559
        %v568 = vunpack.c.l.b16 %v560
        %v569 = vunpack.c.l.b16 %v561
        %v570 = vunpack.c.l.b16 %v562
        %v571 = vpack.c.b16 %v568, %v567
        %v572 = vpack.c.b16 %v570, %v569
        %v576 = vsel %vm303, %v557, 0
        %578 = vmatpush.bf16.msra.mxu0 0
        %579 = vmatpush.bf16.msra.mxu0 0
        %580 = vmatpush.bf16.msra.mxu0 0
        %581 = vmatpush.bf16.msra.mxu0 0
        %582 = vmatpush.bf16.msra.mxu0 0
        %583 = vmatpush.bf16.msra.mxu0 0
        %584 = vmatpush.bf16.msra.mxu0 %v572
        %585 = vmatpush.bf16.msra.mxu0 %v571
        %586 = vmatmul.bf16.gmra.mxu0 %v576
        %v587 = vpop.f32.mrf.mxu0
        %v588 = vadd.f32 0.0, %v587
        %v589 = vpop.f32.mrf.mxu0
        %590 = vdwg.mxu0
        %v595 = vunpack.c.l.b16 %v552
        %v596 = vunpack.c.l.b16 %v553
        %v597 = vunpack.c.l.b16 %v554
        %v598 = vunpack.c.l.b16 %v555
        %v599 = vpack.c.b16 %v596, %v595
        %v600 = vpack.c.b16 %v598, %v597
        %v604 = vsel %vm303, %v551, 0
        %606 = vmatpush.bf16.msra.mxu0 0
        %607 = vmatpush.bf16.msra.mxu0 0
        %608 = vmatpush.bf16.msra.mxu0 0
        %609 = vmatpush.bf16.msra.mxu0 0
        %610 = vmatpush.bf16.msra.mxu0 0
        %611 = vmatpush.bf16.msra.mxu0 0
        %612 = vmatpush.bf16.msra.mxu0 %v600
        %613 = vmatpush.bf16.msra.mxu0 %v599
        %614 = vmatmul.bf16.gmra.mxu0 %v604
        %v615 = vpop.f32.mrf.mxu0
        %v616 = vadd.f32 %v588, %v615
        %v617 = vpop.f32.mrf.mxu0
        %618 = vdwg.mxu0
        %v619 = vld [vmem:[#allocation2 + $0x10] sm:$0xff]
        %v620 = vpack.c.bf16 %v619, %v619
        %s621 = scalar_lea.vmem [#allocation8], 32
        %v622 = vld [vmem:[%s621] sm:$0xf]
        %v623 = vld [vmem:[%s621 + $0x4] sm:$0xf]
        %v624 = vld [vmem:[%s621 + $0x8] sm:$0xf]
        %v625 = vld [vmem:[%s621 + $0xc] sm:$0xf]
        %v630 = vunpack.c.l.b16 %v622
        %v631 = vunpack.c.l.b16 %v623
        %v632 = vunpack.c.l.b16 %v624
        %v633 = vunpack.c.l.b16 %v625
        %v634 = vpack.c.b16 %v631, %v630
        %v635 = vpack.c.b16 %v633, %v632
        %v639 = vsel %vm303, %v620, 0
        %641 = vmatpush.bf16.msra.mxu0 0
        %642 = vmatpush.bf16.msra.mxu0 0
        %643 = vmatpush.bf16.msra.mxu0 0
        %644 = vmatpush.bf16.msra.mxu0 0
        %645 = vmatpush.bf16.msra.mxu0 0
        %646 = vmatpush.bf16.msra.mxu0 0
        %647 = vmatpush.bf16.msra.mxu0 %v635
        %648 = vmatpush.bf16.msra.mxu0 %v634
        %649 = vmatmul.bf16.gmra.mxu0 %v639
        %v650 = vpop.f32.mrf.mxu0
        %v651 = vadd.f32 0.0, %v650
        %v652 = vpop.f32.mrf.mxu0
        %653 = vdwg.mxu0
        %v654 = vadd.f32 %v616, %v651
        %v655 = vmax.f32 %v654, 0.0
        %656 = vst [vmem:[%s292] sm:$0xff] %v655
        %s657 = sand.u32 %s160, 1
        %s658 = scalar_lea.sflag [#allocation7], %s657
        %s659 = sand.u32 %s160, 1
        %s660 = smul.addr %s659, 8
        %s661 = scalar_lea.vmem [#allocation10], %s660
        // Predicated region
        $region53: #{forward.1} parent=39 // pred_check
          %p662 = pneg %p170
        $region54: #{forward.1} parent=39 // pred_check_branch
          %664 = sbr.rel (%p662) target = $region56
        $region55: #{forward.1} parent=39 // pred_region
          %666 = vsyncadd %s658, 0
          %s667 = smul.addr %s32, 8
          %s668 = scalar_lea.hbm %s6, %s667
          %s670 = sshll.u32 %s661, 4
          %s671 = int_to_ptr.vmem [resolvable:$true] %s670
          %s672 = sshll.u32 %s668, 4
          %s673 = int_to_ptr.hbm [resolvable:$true] %s672
          %675 = dma.vmem_to_hbm [thread:$0]  %s671, 128, %s673, %s658
        $region56: #{forward.1} parent=39 // pred_fallthru
          _
      $region40: #{forward.1} parent=5 // pred_fallthru
        _
      %p676 = scmp.le.s32.totalorder 2, %s27
      // Predicated region
      $region57: #{forward.1} parent=5 // pred_check
        %p677 = pneg %p676
      $region58: #{forward.1} parent=5 // pred_check_branch
        %679 = sbr.rel (%p677) target = $region60
      $region59: #{forward.1} parent=5 // pred_region
        %s680 = ssub.s32 %s27, 2
        // Predicated region
        $region61: #{forward.1} parent=59 // pred_check
          %p681 = pneg %p176
        $region62: #{forward.1} parent=59 // pred_check_branch
          %683 = sbr.rel (%p681) target = $region64
        $region63: #{forward.1} parent=59 // pred_region
          %s684 = sand.u32 %s161, 1
          %s685 = scalar_lea.sflag [#allocation7], %s684
          %s686 = sand.u32 %s161, 1
          %s687 = smul.addr %s686, 8
          %s688 = scalar_lea.vmem [#allocation10], %s687
          %690 = dma.done %s685, 128
        $region64: #{forward.1} parent=59 // pred_fallthru
          _
      $region60: #{forward.1} parent=5 // pred_fallthru
        _
    $region6: #{forward.1} parent=1 // loop_footer
      %s31 = sadd.s32 1, %s27
    $region7: #{forward.1} parent=1 // loop_footer_branch
      %26 = sbr.rel target = $region3
    $region8: #{forward.1} parent=1 // loop_exit
      _
    %691 = vsyncpa [#allocation6], 1
    %s692 = scalar_lea.sflag [#allocation6], 1
    %693 = vsyncpa %s692, 1
    %694 = vsyncpa [#allocation9], 1
    %695 = vsyncpa [#allocation7], 1
    %s696 = scalar_lea.sflag [#allocation7], 1
    %697 = vsyncpa %s696, 1

</llo_original>
